<compile_context>
chip_gen: v6e
topology: v6e:2x2x1
jax: 0.10.0
libtpu: 0.0.40
codegen_flags: <defaults>
</compile_context>

<pallas_src>
import jax
import jax.numpy as jnp
from jax.experimental import pallas as pl
from jax.experimental.pallas import tpu as pltpu

_D_IN, _D_H1, _D_H2, _D_OUT = 20, 60, 180, 60
_TILE_B_MAX = 1024  # sweep point from the review (512-2048); ~4-5 MiB live VMEM


def _round_up(n, m):
    return ((n + m - 1) // m) * m


def _cdiv(a, b):
    return (a + b - 1) // b


def _mlp_kernel(x_ref, w1_ref, b1_ref, w2_ref, b2_ref, w3_ref, b3_ref, o_ref):
    # x block: (TB, 20) f32 -> bf16 at the MXU input, f32 accumulation.
    x = x_ref[...].astype(jnp.bfloat16)
    h1 = jnp.dot(x, w1_ref[...], preferred_element_type=jnp.float32) + b1_ref[...]
    h1 = jnp.maximum(h1, 0.0)                                    # (TB, 60)  f32
    h2 = (
        jnp.dot(h1.astype(jnp.bfloat16), w2_ref[...],
                preferred_element_type=jnp.float32)
        + b2_ref[...]
    )
    h2 = jnp.maximum(h2, 0.0)                                    # (TB, 180) f32
    o_ref[...] = (
        jnp.dot(h2.astype(jnp.bfloat16), w3_ref[...],
                preferred_element_type=jnp.float32)
        + b3_ref[...]
    )                                                            # (TB, 60)  f32


def _choose_tile(b_pad, tile_b_max):
    """Batch tile (sublane axis): multiple of 8, <= tile_b_max, and >=2 grid
    steps whenever there is enough batch to split (feeds both v7x TCs)."""
    if b_pad < 256:
        return b_pad
    n_steps = max(2, _cdiv(b_pad, tile_b_max))
    return _round_up(_cdiv(b_pad, n_steps), 8)


def inverse_kinematic_forward(x, params, tile_b_max=_TILE_B_MAX):
    """x: (B, 20) float32; params: dict of w1,b1,w2,b2,w3,b3 (PyTorch (out,in) layout)."""
    B = x.shape[0]
    b_pad = _round_up(max(B, 1), 8)
    tile_b = _choose_tile(b_pad, tile_b_max)
    Bp = _round_up(b_pad, tile_b)
    grid = (Bp // tile_b,)

    # PyTorch nn.Linear weight is (out, in).  With (batch, features) activations
    # we need (in, out); transpose + bf16-cast once in the wrapper (tiny arrays).
    w1t = params["w1"].T.astype(jnp.bfloat16)             # (20, 60)
    w2t = params["w2"].T.astype(jnp.bfloat16)             # (60, 180)
    w3t = params["w3"].T.astype(jnp.bfloat16)             # (180, 60)
    b1 = params["b1"].reshape(1, -1).astype(jnp.float32)  # (1, 60)
    b2 = params["b2"].reshape(1, -1).astype(jnp.float32)  # (1, 180)
    b3 = params["b3"].reshape(1, -1).astype(jnp.float32)  # (1, 60)

    xp = x.astype(jnp.float32)
    if Bp != B:
        xp = jnp.pad(xp, ((0, Bp - B), (0, 0)))           # (Bp, 20)

    const = lambda i: (0, 0)  # weights/biases resident in VMEM (loaded once)
    weight_bytes = 2 * (_D_IN * _D_H1 + _D_H1 * _D_H2 + _D_H2 * _D_OUT) + 4 * (
        _D_H1 + _D_H2 + _D_OUT
    )
    flops = 2 * Bp * (_D_IN * _D_H1 + _D_H1 * _D_H2 + _D_H2 * _D_OUT)
    bytes_accessed = Bp * 4 * (_D_IN + _D_OUT) + weight_bytes

    out = pl.pallas_call(
        _mlp_kernel,
        out_shape=jax.ShapeDtypeStruct((Bp, _D_OUT), jnp.float32),
        grid=grid,
        in_specs=[
            pl.BlockSpec((tile_b, _D_IN), lambda i: (i, 0)),   # x tile (batch on sublanes)
            pl.BlockSpec((_D_IN, _D_H1), const),               # w1^T (resident)
            pl.BlockSpec((1, _D_H1), const),                   # b1
            pl.BlockSpec((_D_H1, _D_H2), const),               # w2^T
            pl.BlockSpec((1, _D_H2), const),                   # b2
            pl.BlockSpec((_D_H2, _D_OUT), const),              # w3^T
            pl.BlockSpec((1, _D_OUT), const),                  # b3
        ],
        out_specs=pl.BlockSpec((tile_b, _D_OUT), lambda i: (i, 0)),
        compiler_params=pltpu.CompilerParams(
            dimension_semantics=("parallel",),
        ),
        cost_estimate=pl.CostEstimate(
            flops=flops, transcendentals=0, bytes_accessed=bytes_accessed
        ),
    )(xp, w1t, b1, w2t, b2, w3t, b3)

    return out[:B]  # drop batch padding (no-op copy when Bp == B)


def init_params(key):
    """Deterministic init mirroring nn.Linear parameter shapes (out, in)."""
    keys = jax.random.split(key, 6)

    def linear(kw, kb, out_f, in_f):
        bound = 1.0 / jnp.sqrt(in_f)
        w = jax.random.uniform(kw, (out_f, in_f), jnp.float32, -bound, bound)
        b = jax.random.uniform(kb, (out_f,), jnp.float32, -bound, bound)
        return w, b

    w1, b1 = linear(keys[0], keys[1], _D_H1, _D_IN)
    w2, b2 = linear(keys[2], keys[3], _D_H2, _D_H1)
    w3, b3 = linear(keys[4], keys[5], _D_OUT, _D_H2)
    return {"w1": w1, "b1": b1, "w2": w2, "b2": b2, "w3": w3, "b3": b3}


def _reference(x, p):
    h1 = jnp.maximum(x @ p["w1"].T + p["b1"], 0.0)
    h2 = jnp.maximum(h1 @ p["w2"].T + p["b2"], 0.0)
    return h2 @ p["w3"].T + p["b3"]


if __name__ == "__main__":
    key = jax.random.PRNGKey(0)
    k_x, k_p = jax.random.split(key)
    params = init_params(k_p)

    # Small batch: single grid step, tile_b = 8 (no padding).
    batch = 8
    x = jax.random.normal(k_x, (batch, _D_IN), jnp.float32)
    out = jax.block_until_ready(inverse_kinematic_forward(x, params))
    ref = _reference(x, params)
    assert out.shape == (batch, _D_OUT)
    err = float(jnp.max(jnp.abs(out - ref)))
    assert err < 2e-2, err  # bf16 MXU inputs, f32 accumulation

    # Larger batch: exercises the multi-step grid + batch-padding path.
    batch2 = 300
    x2 = jax.random.normal(k_x, (batch2, _D_IN), jnp.float32)
    out2 = jax.block_until_ready(inverse_kinematic_forward(x2, params))
    ref2 = _reference(x2, params)
    assert out2.shape == (batch2, _D_OUT)
    err2 = float(jnp.max(jnp.abs(out2 - ref2)))
    assert err2 < 2e-2, err2

    print("KERNEL_OK")
</pallas_src>

<mosaic_0001>
module attributes {stable_mosaic.version = 11 : i64} {
  func.func @_mlp_kernel(%arg0: i32, %arg1: memref<8x20xf32, #tpu.memory_space<vmem>>, %arg2: memref<20x60xbf16, #tpu.memory_space<vmem>>, %arg3: memref<1x60xf32, #tpu.memory_space<vmem>>, %arg4: memref<60x180xbf16, #tpu.memory_space<vmem>>, %arg5: memref<1x180xf32, #tpu.memory_space<vmem>>, %arg6: memref<180x60xbf16, #tpu.memory_space<vmem>>, %arg7: memref<1x60xf32, #tpu.memory_space<vmem>>, %arg8: memref<8x60xf32, #tpu.memory_space<vmem>>) attributes {dimension_semantics = [#tpu.dimension_semantics<parallel>], iteration_bounds = array<i64: 1>, scalar_prefetch = 0 : i64, scratch_operands = 0 : i64, tpu.core_type = #tpu.core_type<tc>, window_params = [{transform_indices = @transform_0, window_bounds = array<i64: 8, 20>}, {pipeline_mode = #tpu.pipeline_mode<synchronous>, transform_indices = @transform_1, window_bounds = array<i64: 20, 60>}, {pipeline_mode = #tpu.pipeline_mode<synchronous>, transform_indices = @transform_2, window_bounds = array<i64: 1, 60>}, {pipeline_mode = #tpu.pipeline_mode<synchronous>, transform_indices = @transform_3, window_bounds = array<i64: 60, 180>}, {pipeline_mode = #tpu.pipeline_mode<synchronous>, transform_indices = @transform_4, window_bounds = array<i64: 1, 180>}, {pipeline_mode = #tpu.pipeline_mode<synchronous>, transform_indices = @transform_5, window_bounds = array<i64: 180, 60>}, {pipeline_mode = #tpu.pipeline_mode<synchronous>, transform_indices = @transform_6, window_bounds = array<i64: 1, 60>}, {transform_indices = @transform_7, window_bounds = array<i64: 8, 60>}]} {
    %c0 = arith.constant 0 : index
    %c0_0 = arith.constant 0 : index
    %0 = vector.load %arg1[%c0, %c0_0] : memref<8x20xf32, #tpu.memory_space<vmem>>, vector<8x20xf32>
    %1 = arith.truncf %0 : vector<8x20xf32> to vector<8x20xbf16>
    %c0_1 = arith.constant 0 : index
    %c0_2 = arith.constant 0 : index
    %2 = vector.load %arg2[%c0_1, %c0_2] : memref<20x60xbf16, #tpu.memory_space<vmem>>, vector<20x60xbf16>
    %cst = arith.constant dense<0.000000e+00> : vector<8x60xf32>
    %3 = tpu.matmul %1, %2, %cst {dimension_numbers = #tpu.dot_dimension_numbers<[1], [0], [0], [1], [0, 0, 1, 1], [], []>} : vector<8x20xbf16>, vector<20x60xbf16>, vector<8x60xf32> -> vector<8x60xf32>
    %c0_3 = arith.constant 0 : index
    %c0_4 = arith.constant 0 : index
    %4 = vector.load %arg3[%c0_3, %c0_4] : memref<1x60xf32, #tpu.memory_space<vmem>>, vector<1x60xf32>
    %5 = vector.broadcast %4 : vector<1x60xf32> to vector<8x60xf32>
    %6 = arith.addf %3, %5 : vector<8x60xf32>
    %cst_5 = arith.constant 0.000000e+00 : f32
    %7 = vector.broadcast %cst_5 : f32 to vector<8x60xf32>
    %8 = arith.maximumf %6, %7 : vector<8x60xf32>
    %9 = arith.truncf %8 : vector<8x60xf32> to vector<8x60xbf16>
    %c0_6 = arith.constant 0 : index
    %c0_7 = arith.constant 0 : index
    %10 = vector.load %arg4[%c0_6, %c0_7] : memref<60x180xbf16, #tpu.memory_space<vmem>>, vector<60x180xbf16>
    %cst_8 = arith.constant dense<0.000000e+00> : vector<8x180xf32>
    %11 = tpu.matmul %9, %10, %cst_8 {dimension_numbers = #tpu.dot_dimension_numbers<[1], [0], [0], [1], [0, 0, 1, 1], [], []>} : vector<8x60xbf16>, vector<60x180xbf16>, vector<8x180xf32> -> vector<8x180xf32>
    %c0_9 = arith.constant 0 : index
    %c0_10 = arith.constant 0 : index
    %12 = vector.load %arg5[%c0_9, %c0_10] : memref<1x180xf32, #tpu.memory_space<vmem>>, vector<1x180xf32>
    %13 = vector.broadcast %12 : vector<1x180xf32> to vector<8x180xf32>
    %14 = arith.addf %11, %13 : vector<8x180xf32>
    %cst_11 = arith.constant 0.000000e+00 : f32
    %15 = vector.broadcast %cst_11 : f32 to vector<8x180xf32>
    %16 = arith.maximumf %14, %15 : vector<8x180xf32>
    %17 = arith.truncf %16 : vector<8x180xf32> to vector<8x180xbf16>
    %c0_12 = arith.constant 0 : index
    %c0_13 = arith.constant 0 : index
    %18 = vector.load %arg6[%c0_12, %c0_13] : memref<180x60xbf16, #tpu.memory_space<vmem>>, vector<180x60xbf16>
    %cst_14 = arith.constant dense<0.000000e+00> : vector<8x60xf32>
    %19 = tpu.matmul %17, %18, %cst_14 {dimension_numbers = #tpu.dot_dimension_numbers<[1], [0], [0], [1], [0, 0, 1, 1], [], []>} : vector<8x180xbf16>, vector<180x60xbf16>, vector<8x60xf32> -> vector<8x60xf32>
    %c0_15 = arith.constant 0 : index
    %c0_16 = arith.constant 0 : index
    %20 = vector.load %arg7[%c0_15, %c0_16] : memref<1x60xf32, #tpu.memory_space<vmem>>, vector<1x60xf32>
    %21 = vector.broadcast %20 : vector<1x60xf32> to vector<8x60xf32>
    %22 = arith.addf %19, %21 : vector<8x60xf32>
    %c0_17 = arith.constant 0 : index
    %c0_18 = arith.constant 0 : index
    %23 = vector.load %arg8[%c0_17, %c0_18] : memref<8x60xf32, #tpu.memory_space<vmem>>, vector<8x60xf32>
    tpu.vector_store %arg8[%c0_17, %c0_18], %22 {strides = array<i32>} : memref<8x60xf32, #tpu.memory_space<vmem>>, vector<8x60xf32>,
    return
  }
  func.func @transform_0(%arg0: i32) -> (i32, i32) {
    %c0_i32 = arith.constant 0 : i32
    %c0_i32_0 = arith.constant 0 : i32
    return %arg0, %c0_i32 : i32, i32
  }
  func.func @transform_1(%arg0: i32) -> (i32, i32) {
    %c0_i32 = arith.constant 0 : i32
    %c0_i32_0 = arith.constant 0 : i32
    %c0_i32_1 = arith.constant 0 : i32
    return %c0_i32, %c0_i32_0 : i32, i32
  }
  func.func @transform_2(%arg0: i32) -> (i32, i32) {
    %c0_i32 = arith.constant 0 : i32
    %c0_i32_0 = arith.constant 0 : i32
    %c0_i32_1 = arith.constant 0 : i32
    return %c0_i32, %c0_i32_0 : i32, i32
  }
  func.func @transform_3(%arg0: i32) -> (i32, i32) {
    %c0_i32 = arith.constant 0 : i32
    %c0_i32_0 = arith.constant 0 : i32
    %c0_i32_1 = arith.constant 0 : i32
    return %c0_i32, %c0_i32_0 : i32, i32
  }
  func.func @transform_4(%arg0: i32) -> (i32, i32) {
    %c0_i32 = arith.constant 0 : i32
    %c0_i32_0 = arith.constant 0 : i32
    %c0_i32_1 = arith.constant 0 : i32
    return %c0_i32, %c0_i32_0 : i32, i32
  }
  func.func @transform_5(%arg0: i32) -> (i32, i32) {
    %c0_i32 = arith.constant 0 : i32
    %c0_i32_0 = arith.constant 0 : i32
    %c0_i32_1 = arith.constant 0 : i32
    return %c0_i32, %c0_i32_0 : i32, i32
  }
  func.func @transform_6(%arg0: i32) -> (i32, i32) {
    %c0_i32 = arith.constant 0 : i32
    %c0_i32_0 = arith.constant 0 : i32
    %c0_i32_1 = arith.constant 0 : i32
    return %c0_i32, %c0_i32_0 : i32, i32
  }
  func.func @transform_7(%arg0: i32) -> (i32, i32) {
    %c0_i32 = arith.constant 0 : i32
    %c0_i32_0 = arith.constant 0 : i32
    return %arg0, %c0_i32 : i32, i32
  }
}

</mosaic_0001>

<llo_original>
// kernel: tpu_custom_call.1
$region0: #{tpu_custom_call.1}
  #allocation0 [shape = 'u32[]', space=smem, size = 0x4, offset = 0x4, fixed_abs, tag = 'smem constant byte address 0x4 - core index']
  #allocation1 [shape = 'u32[144,128]{1,0:T(1,128)}', space=vmem, size = 0x12000, scoped, tag = 'internal scratch']
  %s0 = inlined_call_operand.vmem [shape: f32[8,20], index: 0, kind: input, shape index: {}]
  %s1 = inlined_call_operand.vmem [shape: bf16[20,60], index: 1, kind: input, shape index: {}]
  %s2 = inlined_call_operand.vmem [shape: f32[1,60], index: 2, kind: input, shape index: {}]
  %s3 = inlined_call_operand.vmem [shape: bf16[60,180], index: 3, kind: input, shape index: {}]
  %s4 = inlined_call_operand.vmem [shape: f32[1,180], index: 4, kind: input, shape index: {}]
  %s5 = inlined_call_operand.vmem [shape: bf16[180,60], index: 5, kind: input, shape index: {}]
  %s6 = inlined_call_operand.vmem [shape: f32[1,60], index: 6, kind: input, shape index: {}]
  %s7 = inlined_call_operand.hbm [shape: f32[8,60], index: 7, kind: output, shape index: {}]
  %s8 = sld [smem:[#allocation0]]
  $region38: #{tpu_custom_call.1} parent=0
    _
  %s10 = ssub.s32 1, %s8
  %s11 = scalar_select 0, %s10, %s8
  $region1: #{tpu_custom_call.1} parent=0
    #allocation2 [shape = 'u8[4096]{0}', space=vmem, size = 0x1000, scoped, tag = 'output window, operand 0, single buffered']
    #allocation3 [shape = 's32[1]{0}', space=sflag, size = 0x4, scoped, tag = 'scoped memory for tpu_custom_call.1']
    %12 = vsyncpa [#allocation3], 0
    // Predicated region
    $region2: #{tpu_custom_call.1} parent=1 // pred_check
      _
    $region3: #{tpu_custom_call.1} parent=1 // pred_check_branch
      %14 = sbr.rel (0) target = $region5
    $region4: #{tpu_custom_call.1} parent=1 // pred_region
      _
    $region5: #{tpu_custom_call.1} parent=1 // pred_fallthru
      _
    // Predicated region
    $region6: #{tpu_custom_call.1} parent=1 // pred_check
      _
    $region7: #{tpu_custom_call.1} parent=1 // pred_check_branch
      %16 = sbr.rel (0) target = $region9
    $region8: #{tpu_custom_call.1} parent=1 // pred_region
      _
    $region9: #{tpu_custom_call.1} parent=1 // pred_fallthru
      _
    // Predicated region
    $region10: #{tpu_custom_call.1} parent=1 // pred_check
      _
    $region11: #{tpu_custom_call.1} parent=1 // pred_check_branch
      %18 = sbr.rel (0) target = $region13
    $region12: #{tpu_custom_call.1} parent=1 // pred_region
      _
    $region13: #{tpu_custom_call.1} parent=1 // pred_fallthru
      _
    // Predicated region
    $region14: #{tpu_custom_call.1} parent=1 // pred_check
      _
    $region15: #{tpu_custom_call.1} parent=1 // pred_check_branch
      %20 = sbr.rel (0) target = $region17
    $region16: #{tpu_custom_call.1} parent=1 // pred_region
      _
    $region17: #{tpu_custom_call.1} parent=1 // pred_fallthru
      _
    // Predicated region
    $region18: #{tpu_custom_call.1} parent=1 // pred_check
      _
    $region19: #{tpu_custom_call.1} parent=1 // pred_check_branch
      %22 = sbr.rel (0) target = $region21
    $region20: #{tpu_custom_call.1} parent=1 // pred_region
      _
    $region21: #{tpu_custom_call.1} parent=1 // pred_fallthru
      _
    // Predicated region
    $region22: #{tpu_custom_call.1} parent=1 // pred_check
      _
    $region23: #{tpu_custom_call.1} parent=1 // pred_check_branch
      %24 = sbr.rel (0) target = $region25
    $region24: #{tpu_custom_call.1} parent=1 // pred_region
      _
    $region25: #{tpu_custom_call.1} parent=1 // pred_fallthru
      _
    // Predicated region
    $region26: #{tpu_custom_call.1} parent=1 // pred_check
      _
    $region27: #{tpu_custom_call.1} parent=1 // pred_check_branch
      %26 = sbr.rel (0) target = $region29
    $region28: #{tpu_custom_call.1} parent=1 // pred_region
      _
    $region29: #{tpu_custom_call.1} parent=1 // pred_fallthru
      _
    %v28 = vld [vmem:[%s0] sm:$0xff]
    %v29 = vpack.c.bf16 %v28, %v28
    %v30 = vld [vmem:[%s1] sm:$0xf]
    %v31 = vld [vmem:[%s1 + $0x4] sm:$0xf]
    %v32 = vld [vmem:[%s1 + $0x8] sm:$0x3]
    %v33 = vld [vmem:[%s2] sm:$0x1]
    %v35 = vlaneseq
    %v36 = vshrl.u32 %v35, 7
    %v37 = vsub.s32 0, %v36
    %v38 = vrot.slane %v33, %v37
    %v43 = vunpack.c.l.b16 %v30
    %v44 = vunpack.c.l.b16 %v31
    %v45 = vunpack.c.l.b16 %v32
    %v46 = vpack.c.b16 %v44, %v43
    %v47 = vpack.c.b16 %v45, %v45
    %vm49 = vcmask 162816
    %v51 = vsel %vm49, %v29, 0
    %vm53 = vcmask 1041408
    %v55 = vsel %vm53, %v47, 0
    %57 = vmatprep.subr.bf16.mxu0 0
    %58 = vmatpush1.bf16.msra.mxu0 0
    %59 = vmatprep.subr.bf16.mxu0 0
    %60 = vmatpush1.bf16.msra.mxu0 0
    %61 = vmatprep.subr.bf16.mxu0 0
    %62 = vmatpush1.bf16.msra.mxu0 0
    %63 = vmatprep.subr.bf16.mxu0 0
    %64 = vmatpush1.bf16.msra.mxu0 0
    %65 = vmatprep.subr.bf16.mxu0 0
    %66 = vmatpush1.bf16.msra.mxu0 0
    %67 = vmatprep.subr.bf16.mxu0 0
    %68 = vmatpush1.bf16.msra.mxu0 0
    %69 = vmatprep.subr.bf16.mxu0 0
    %70 = vmatpush1.bf16.msra.mxu0 %v55
    %71 = vmatprep.subr.bf16.mxu0 0
    %72 = vmatpush1.bf16.msra.mxu0 %v46
    %73 = vmatprep.subr.bf16.mxu0 0
    %74 = vmatpush2.bf16.msra.mxu0 0
    %75 = vmatprep.subr.bf16.mxu0 0
    %76 = vmatpush2.bf16.msra.mxu0 0
    %77 = vmatprep.subr.bf16.mxu0 0
    %78 = vmatpush2.bf16.msra.mxu0 0
    %79 = vmatprep.subr.bf16.mxu0 0
    %80 = vmatpush2.bf16.msra.mxu0 0
    %81 = vmatprep.subr.bf16.mxu0 0
    %82 = vmatpush2.bf16.msra.mxu0 0
    %83 = vmatprep.subr.bf16.mxu0 0
    %84 = vmatpush2.bf16.msra.mxu0 0
    %85 = vmatprep.subr.bf16.mxu0 0
    %86 = vmatpush2.bf16.msra.mxu0 0
    %87 = vmatprep.subr.bf16.mxu0 0
    %88 = vmatpush2.bf16.msra.mxu0 0
    %89 = vmatprep.mubr.bf16.mxu0 0
    %90 = vmatmul.mubr.bf16.gmra.mxu0 %v51
    %v91 = vpop.f32.mrf.mxu0
    %v92 = vadd.f32 %v38, %v91
    %v93 = vpop.f32.mrf.mxu0
    %v94 = vpop.f32.mrf.mxu0
    %v95 = vpop.f32.mrf.mxu0
    %96 = vdwg.mxu0
    %v97 = vmax.f32 %v92, 0.0
    %v98 = vpack.c.bf16 %v97, %v97
    %v99 = vld [vmem:[%s3] sm:$0xff]
    %v100 = vld [vmem:[%s3 + $0x8] sm:$0xff]
    %v101 = vld [vmem:[%s3 + $0x10] sm:$0xff]
    %v102 = vld [vmem:[%s3 + $0x18] sm:$0xff]
    %v103 = vld [vmem:[%s3 + $0x20] sm:$0xff]
    %v104 = vld [vmem:[%s3 + $0x28] sm:$0xff]
    %v105 = vld [vmem:[%s3 + $0x30] sm:$0xff]
    %v106 = vld [vmem:[%s3 + $0x38] sm:$0x33]
    %v107 = vld [vmem:[%s4] sm:$0x3]
    %v109 = vlaneseq
    %v110 = vshrl.u32 %v109, 7
    %v111 = vsub.s32 0, %v110
    %v112 = vrot.slane %v107, %v111
    %v113 = vlaneseq
    %v114 = vshrl.u32 %v113, 7
    %v115 = vsub.s32 1, %v114
    %v116 = vrot.slane %v107, %v115
    %v127 = vunpack.c.l.b16 %v99
    %v128 = vunpack.c.h.b16 %v99
    %v129 = vunpack.c.l.b16 %v100
    %v130 = vunpack.c.h.b16 %v100
    %v131 = vunpack.c.l.b16 %v101
    %v132 = vunpack.c.h.b16 %v101
    %v133 = vunpack.c.l.b16 %v102
    %v134 = vunpack.c.h.b16 %v102
    %v135 = vunpack.c.l.b16 %v103
    %v136 = vunpack.c.h.b16 %v103
    %v137 = vunpack.c.l.b16 %v104
    %v138 = vunpack.c.h.b16 %v104
    %v139 = vunpack.c.l.b16 %v105
    %v140 = vunpack.c.h.b16 %v105
    %v141 = vunpack.c.l.b16 %v106
    %v142 = vunpack.c.h.b16 %v106
    %v143 = vpack.c.b16 %v129, %v127
    %v144 = vpack.c.b16 %v130, %v128
    %v145 = vpack.c.b16 %v133, %v131
    %v146 = vpack.c.b16 %v134, %v132
    %v147 = vpack.c.b16 %v137, %v135
    %v148 = vpack.c.b16 %v138, %v136
    %v149 = vpack.c.b16 %v141, %v139
    %v150 = vpack.c.b16 %v142, %v140
    %vm157 = vcmask 490496
    %v159 = vsel %vm157, %v98, 0
    %vm161 = vcmask 1045504
    %v163 = vsel %vm161, %v149, 0
    %v166 = vsel %vm161, %v150, 0
    %168 = vmatprep.subr.bf16.mxu0 0
    %169 = vmatpush1.bf16.msra.mxu0 0
    %170 = vmatprep.subr.bf16.mxu0 0
    %171 = vmatpush1.bf16.msra.mxu0 0
    %172 = vmatprep.subr.bf16.mxu0 0
    %173 = vmatpush1.bf16.msra.mxu0 0
    %174 = vmatprep.subr.bf16.mxu0 0
    %175 = vmatpush1.bf16.msra.mxu0 0
    %176 = vmatprep.subr.bf16.mxu0 %v166
    %177 = vmatpush1.bf16.msra.mxu0 %v163
    %178 = vmatprep.subr.bf16.mxu0 %v148
    %179 = vmatpush1.bf16.msra.mxu0 %v147
    %180 = vmatprep.subr.bf16.mxu0 %v146
    %181 = vmatpush1.bf16.msra.mxu0 %v145
    %182 = vmatprep.subr.bf16.mxu0 %v144
    %183 = vmatpush1.bf16.msra.mxu0 %v143
    %184 = vmatprep.subr.bf16.mxu0 0
    %185 = vmatpush2.bf16.msra.mxu0 0
    %186 = vmatprep.subr.bf16.mxu0 0
    %187 = vmatpush2.bf16.msra.mxu0 0
    %188 = vmatprep.subr.bf16.mxu0 0
    %189 = vmatpush2.bf16.msra.mxu0 0
    %190 = vmatprep.subr.bf16.mxu0 0
    %191 = vmatpush2.bf16.msra.mxu0 0
    %192 = vmatprep.subr.bf16.mxu0 0
    %193 = vmatpush2.bf16.msra.mxu0 0
    %194 = vmatprep.subr.bf16.mxu0 0
    %195 = vmatpush2.bf16.msra.mxu0 0
    %196 = vmatprep.subr.bf16.mxu0 0
    %197 = vmatpush2.bf16.msra.mxu0 0
    %198 = vmatprep.subr.bf16.mxu0 0
    %199 = vmatpush2.bf16.msra.mxu0 0
    %200 = vmatprep.mubr.bf16.mxu0 0
    %201 = vmatmul.mubr.bf16.gmra.mxu0 %v159
    %v202 = vpop.f32.mrf.mxu0
    %v203 = vadd.f32 %v112, %v202
    %v204 = vpop.f32.mrf.mxu0
    %v205 = vadd.f32 %v116, %v204
    %v206 = vpop.f32.mrf.mxu0
    %v207 = vpop.f32.mrf.mxu0
    %208 = vdwg.mxu0
    %v209 = vmax.f32 %v203, 0.0
    %v210 = vmax.f32 %v205, 0.0
    %v211 = vpack.c.bf16 %v209, %v209
    %v212 = vpack.c.bf16 %v210, %v210
    %v213 = vld [vmem:[%s5] sm:$0xf]
    %v214 = vld [vmem:[%s5 + $0x4] sm:$0xf]
    %v215 = vld [vmem:[%s5 + $0x8] sm:$0xf]
    %v216 = vld [vmem:[%s5 + $0xc] sm:$0xf]
    %v217 = vld [vmem:[%s5 + $0x10] sm:$0xf]
    %v218 = vld [vmem:[%s5 + $0x14] sm:$0xf]
    %v219 = vld [vmem:[%s5 + $0x18] sm:$0xf]
    %v220 = vld [vmem:[%s5 + $0x1c] sm:$0xf]
    %v221 = vld [vmem:[%s5 + $0x20] sm:$0xf]
    %v222 = vld [vmem:[%s5 + $0x24] sm:$0xf]
    %v223 = vld [vmem:[%s5 + $0x28] sm:$0xf]
    %v224 = vld [vmem:[%s5 + $0x2c] sm:$0xf]
    %v225 = vld [vmem:[%s5 + $0x30] sm:$0xf]
    %v226 = vld [vmem:[%s5 + $0x34] sm:$0xf]
    %v227 = vld [vmem:[%s5 + $0x38] sm:$0xf]
    %v228 = vld [vmem:[%s5 + $0x3c] sm:$0xf]
    %v229 = vld [vmem:[%s5 + $0x40] sm:$0xf]
    %v230 = vld [vmem:[%s5 + $0x44] sm:$0xf]
    %v231 = vld [vmem:[%s5 + $0x48] sm:$0xf]
    %v232 = vld [vmem:[%s5 + $0x4c] sm:$0xf]
    %v233 = vld [vmem:[%s5 + $0x50] sm:$0xf]
    %v234 = vld [vmem:[%s5 + $0x54] sm:$0xf]
    %v235 = vld [vmem:[%s5 + $0x58] sm:$0x3]
    %v236 = vld [vmem:[%s6] sm:$0x1]
    %v238 = vlaneseq
    %v239 = vshrl.u32 %v238, 7
    %v240 = vsub.s32 0, %v239
    %v241 = vrot.slane %v236, %v240
    %v266 = vunpack.c.l.b16 %v213
    %v267 = vunpack.c.l.b16 %v214
    %v268 = vunpack.c.l.b16 %v215
    %v269 = vunpack.c.l.b16 %v216
    %v270 = vunpack.c.l.b16 %v217
    %v271 = vunpack.c.l.b16 %v218
    %v272 = vunpack.c.l.b16 %v219
    %v273 = vunpack.c.l.b16 %v220
    %v274 = vunpack.c.l.b16 %v221
    %v275 = vunpack.c.l.b16 %v222
    %v276 = vunpack.c.l.b16 %v223
    %v277 = vunpack.c.l.b16 %v224
    %v278 = vunpack.c.l.b16 %v225
    %v279 = vunpack.c.l.b16 %v226
    %v280 = vunpack.c.l.b16 %v227
    %v281 = vunpack.c.l.b16 %v228
    %v282 = vunpack.c.l.b16 %v229
    %v283 = vunpack.c.l.b16 %v230
    %v284 = vunpack.c.l.b16 %v231
    %v285 = vunpack.c.l.b16 %v232
    %v286 = vunpack.c.l.b16 %v233
    %v287 = vunpack.c.l.b16 %v234
    %v288 = vunpack.c.l.b16 %v235
    %v289 = vpack.c.b16 %v267, %v266
    %v290 = vpack.c.b16 %v269, %v268
    %v291 = vpack.c.b16 %v271, %v270
    %v292 = vpack.c.b16 %v273, %v272
    %v293 = vpack.c.b16 %v275, %v274
    %v294 = vpack.c.b16 %v277, %v276
    %v295 = vpack.c.b16 %v279, %v278
    %v296 = vpack.c.b16 %v281, %v280
    %v297 = vpack.c.b16 %v283, %v282
    %v298 = vpack.c.b16 %v285, %v284
    %v299 = vpack.c.b16 %v287, %v286
    %v300 = vpack.c.b16 %v288, %v288
    %vm312 = vcmask 424960
    %v314 = vsel %vm312, %v212, 0
    %v317 = vsel %vm53, %v300, 0
    %319 = vmatprep.subr.bf16.mxu0 0
    %320 = vmatpush1.bf16.msra.mxu0 %v296
    %321 = vmatprep.subr.bf16.mxu0 0
    %322 = vmatpush1.bf16.msra.mxu0 %v295
    %323 = vmatprep.subr.bf16.mxu0 0
    %324 = vmatpush1.bf16.msra.mxu0 %v294
    %325 = vmatprep.subr.bf16.mxu0 0
    %326 = vmatpush1.bf16.msra.mxu0 %v293
    %327 = vmatprep.subr.bf16.mxu0 0
    %328 = vmatpush1.bf16.msra.mxu0 %v292
    %329 = vmatprep.subr.bf16.mxu0 0
    %330 = vmatpush1.bf16.msra.mxu0 %v291
    %331 = vmatprep.subr.bf16.mxu0 0
    %332 = vmatpush1.bf16.msra.mxu0 %v290
    %333 = vmatprep.subr.bf16.mxu0 0
    %334 = vmatpush1.bf16.msra.mxu0 %v289
    %335 = vmatprep.subr.bf16.mxu0 0
    %336 = vmatpush2.bf16.msra.mxu0 0
    %337 = vmatprep.subr.bf16.mxu0 0
    %338 = vmatpush2.bf16.msra.mxu0 0
    %339 = vmatprep.subr.bf16.mxu0 0
    %340 = vmatpush2.bf16.msra.mxu0 0
    %341 = vmatprep.subr.bf16.mxu0 0
    %342 = vmatpush2.bf16.msra.mxu0 0
    %343 = vmatprep.subr.bf16.mxu0 0
    %344 = vmatpush2.bf16.msra.mxu0 %v317
    %345 = vmatprep.subr.bf16.mxu0 0
    %346 = vmatpush2.bf16.msra.mxu0 %v299
    %347 = vmatprep.subr.bf16.mxu0 0
    %348 = vmatpush2.bf16.msra.mxu0 %v298
    %349 = vmatprep.subr.bf16.mxu0 0
    %350 = vmatpush2.bf16.msra.mxu0 %v297
    %351 = vmatprep.mubr.bf16.mxu0 %v314
    %352 = vmatmul.mubr.bf16.gmra.mxu0 %v211
    %v353 = vpop.f32.mrf.mxu0
    %v354 = vadd.f32 %v241, %v353
    %v355 = vpop.f32.mrf.mxu0
    %v356 = vpop.f32.mrf.mxu0
    %v357 = vpop.f32.mrf.mxu0
    %358 = vdwg.mxu0
    %359 = vst.msk [vmem:[#allocation2] sm:$0xff] %vm157, %v354
    // Predicated region
    $region30: #{tpu_custom_call.1} parent=1 // pred_check
      _
    $region31: #{tpu_custom_call.1} parent=1 // pred_check_branch
      %361 = sbr.rel (0) target = $region33
    $region32: #{tpu_custom_call.1} parent=1 // pred_region
      %s363 = ssub.s32 128, 128
      %364 = vsyncadd [#allocation3], %s363
      %s366 = sshll.u32 [#allocation2], 4
      %s367 = int_to_ptr.vmem [resolvable:$true] %s366
      %369 = dma.vmem_to_hbm [thread:$0]  %s367, 128, %s7, [#allocation3]
    $region33: #{tpu_custom_call.1} parent=1 // pred_fallthru
      _
    // Predicated region
    $region34: #{tpu_custom_call.1} parent=1 // pred_check
      _
    $region35: #{tpu_custom_call.1} parent=1 // pred_check_branch
      %371 = sbr.rel (0) target = $region37
    $region36: #{tpu_custom_call.1} parent=1 // pred_region
      %372 = dma.done [#allocation3], 128
    $region37: #{tpu_custom_call.1} parent=1 // pred_fallthru
      _
    %373 = vsyncpa [#allocation3], 1

</llo_original>
